<compile_context>
chip_gen: v6e
topology: v6e:2x2x1
jax: 0.10.0
libtpu: 0.0.40
codegen_flags: <defaults>
</compile_context>

<pallas_src>
import functools

import jax
import jax.numpy as jnp
from jax.experimental import pallas as pl
from jax.experimental.pallas import tpu as pltpu


def _tv_spectral_kernel(x_ref, o_ref, acc_ref, *, scale):
    """One grid step = (batch element b) x (spatial tile s).

    x_ref  : (1, C, tHW) input tile, auto-pipelined HBM->VMEM.
    o_ref  : (1, 1, 1) per-batch scalar output (written once, on the last tile).
    acc_ref: (C-1, tHW) float32 VMEM scratch holding elementwise partial sums
             across the spatial ("arbitrary") grid axis.
    """
    s = pl.program_id(1)

    @pl.when(s == 0)
    def _init():
        acc_ref[...] = jnp.zeros_like(acc_ref)

    # Static ref-view slices: load just the two shifted channel slabs.
    hi = x_ref[0, 1:, :].astype(jnp.float32)   # (C-1, tHW)
    lo = x_ref[0, :-1, :].astype(jnp.float32)  # (C-1, tHW)
    d = hi - lo
    acc_ref[...] += d * d                      # pure VPU elementwise accumulate

    @pl.when(s == pl.num_programs(1) - 1)
    def _finalize():
        # One full reduce per batch element (XLU slot, hidden under the
        # HBM-bound input stream) and a single tiny pre-scaled store.
        total = jnp.sum(acc_ref[...]) * scale
        o_ref[...] = total.reshape(1, 1, 1)


def _pick_spatial_tile(hw, c, itemsize, budget_bytes=16 * 1024 * 1024):
    """Largest spatial tile that (a) is a multiple of 128, (b) divides hw, and
    (c) keeps the double-buffered input tile + f32 accumulator under
    `budget_bytes`.  Falls back to the full spatial extent when hw is not a
    multiple of 128 (full-extent blocks are always legal)."""
    if hw % 128 != 0:
        return hw
    per_elem = 2 * c * itemsize + (c - 1) * 4   # 2x input buffers + f32 acc
    best = 128                                  # minimum lane-dense tile
    t = 128
    while t <= hw:
        if hw % t == 0 and per_elem * t <= budget_bytes:
            best = t
        t += 128
    return best


def tv_loss_spectral(x, weight=1.0, *, tile_budget_bytes=16 * 1024 * 1024):
    """x: (B, C, H, W). Returns scalar float32
    = weight * 2 * sum((x[:,1:] - x[:,:-1])**2) / ((C-1)*H*W) / B."""
    B, C, H, W = x.shape
    if C < 2:
        # The torch module would divide by a zero element count here.
        raise ValueError("TVLossSpectral requires at least 2 channels.")
    HW = H * W

    # Lane-dense layout: flatten spatial dims (free reshape on contiguous NCHW).
    xr = x.reshape(B, C, HW)

    itemsize = jnp.dtype(x.dtype).itemsize
    t_hw = _pick_spatial_tile(HW, C, itemsize, budget_bytes=tile_budget_bytes)
    n_s = HW // t_hw

    count_c = (C - 1) * H * W
    scale = float(weight) * 2.0 / float(count_c) / float(B)

    per_batch = pl.pallas_call(
        functools.partial(_tv_spectral_kernel, scale=scale),
        out_shape=jax.ShapeDtypeStruct((B, 1, 1), jnp.float32),
        grid_spec=pltpu.PrefetchScalarGridSpec(
            num_scalar_prefetch=0,
            grid=(B, n_s),  # batch (independent) x spatial tiles (reduction)
            in_specs=[pl.BlockSpec((1, C, t_hw), lambda b, s: (b, 0, s))],
            out_specs=pl.BlockSpec((1, 1, 1), lambda b, s: (b, 0, 0)),
            scratch_shapes=[pltpu.VMEM((C - 1, t_hw), jnp.float32)],
        ),
        compiler_params=pltpu.CompilerParams(
            dimension_semantics=("parallel", "arbitrary"),
            vmem_limit_bytes=32 * 1024 * 1024,
        ),
    )(xr)

    # Final reduction over B tiny pre-scaled scalars.
    return jnp.sum(per_batch)


def tv_loss_spectral_ref(x, weight=1.0):
    B, C, H, W = x.shape
    count_c = (C - 1) * H * W
    xf = x.astype(jnp.float32)
    c_tv = jnp.sum((xf[:, 1:, :, :] - xf[:, :-1, :, :]) ** 2)
    return weight * 2.0 * (c_tv / count_c) / B


if __name__ == "__main__":
    key = jax.random.PRNGKey(0)

    # Small shape consistent with the module's forward: (B, C, H, W).
    B, C, H, W = 2, 4, 16, 16
    x = jax.random.normal(key, (B, C, H, W), dtype=jnp.float32)

    out = jax.block_until_ready(tv_loss_spectral(x, weight=1.0))
    ref = jax.block_until_ready(tv_loss_spectral_ref(x, weight=1.0))
    assert jnp.allclose(out, ref, rtol=1e-5, atol=1e-6), (out, ref)

    # Exercise the multi-tile accumulation path (n_s > 1) with a tiny budget.
    x2 = jax.random.normal(jax.random.PRNGKey(1), (2, 4, 16, 32),
                           dtype=jnp.float32)
    out2 = jax.block_until_ready(
        tv_loss_spectral(x2, weight=0.5, tile_budget_bytes=8 * 1024))
    ref2 = jax.block_until_ready(tv_loss_spectral_ref(x2, weight=0.5))
    assert jnp.allclose(out2, ref2, rtol=1e-5, atol=1e-6), (out2, ref2)

    print("KERNEL_OK")
</pallas_src>

<mosaic_0001>
module attributes {stable_mosaic.version = 11 : i64} {
  func.func @_tv_spectral_kernel(%arg0: i32, %arg1: i32, %arg2: memref<1x4x256xf32, #tpu.memory_space<vmem>>, %arg3: memref<1x1x1xf32, #tpu.memory_space<vmem>>, %arg4: memref<3x256xf32, #tpu.memory_space<vmem>>) attributes {dimension_semantics = [#tpu.dimension_semantics<parallel>, #tpu.dimension_semantics<arbitrary>], iteration_bounds = array<i64: 2, 1>, scalar_prefetch = 0 : i64, scratch_operands = 1 : i64, tpu.core_type = #tpu.core_type<tc>, window_params = [{transform_indices = @transform_0, window_bounds = array<i64: 1, 4, 256>}, {transform_indices = @transform_1, window_bounds = array<i64: 1, 1, 1>}]} {
    %c0_i32 = arith.constant 0 : i32
    %0 = arith.cmpi eq, %arg1, %c0_i32 : i32
    %1 = arith.extui %0 : i1 to i32
    %c0_i32_0 = arith.constant 0 : i32
    %2 = arith.cmpi ne, %1, %c0_i32_0 : i32
    scf.if %2 {
      %cst = arith.constant 0.000000e+00 : f32
      %15 = vector.broadcast %cst : f32 to vector<3x256xf32>
      %c0_11 = arith.constant 0 : index
      %c0_12 = arith.constant 0 : index
      %16 = vector.load %arg4[%c0_11, %c0_12] : memref<3x256xf32, #tpu.memory_space<vmem>>, vector<3x256xf32>
      tpu.vector_store %arg4[%c0_11, %c0_12], %15 {strides = array<i32>} : memref<3x256xf32, #tpu.memory_space<vmem>>, vector<3x256xf32>,
    } else {
    }
    %c0 = arith.constant 0 : index
    %c1 = arith.constant 1 : index
    %c0_1 = arith.constant 0 : index
    %3 = vector.load %arg2[%c0, %c1, %c0_1] : memref<1x4x256xf32, #tpu.memory_space<vmem>>, vector<1x3x256xf32>
    %4 = vector.shape_cast %3 : vector<1x3x256xf32> to vector<3x256xf32>
    %c0_2 = arith.constant 0 : index
    %c0_3 = arith.constant 0 : index
    %c0_4 = arith.constant 0 : index
    %5 = vector.load %arg2[%c0_2, %c0_3, %c0_4] : memref<1x4x256xf32, #tpu.memory_space<vmem>>, vector<1x3x256xf32>
    %6 = vector.shape_cast %5 : vector<1x3x256xf32> to vector<3x256xf32>
    %7 = arith.subf %4, %6 : vector<3x256xf32>
    %c0_5 = arith.constant 0 : index
    %c0_6 = arith.constant 0 : index
    %8 = vector.load %arg4[%c0_5, %c0_6] : memref<3x256xf32, #tpu.memory_space<vmem>>, vector<3x256xf32>
    %9 = arith.mulf %7, %7 : vector<3x256xf32>
    %10 = arith.addf %8, %9 : vector<3x256xf32>
    %c0_7 = arith.constant 0 : index
    %c0_8 = arith.constant 0 : index
    %11 = vector.load %arg4[%c0_7, %c0_8] : memref<3x256xf32, #tpu.memory_space<vmem>>, vector<3x256xf32>
    tpu.vector_store %arg4[%c0_7, %c0_8], %10 {strides = array<i32>} : memref<3x256xf32, #tpu.memory_space<vmem>>, vector<3x256xf32>,
    %c0_i32_9 = arith.constant 0 : i32
    %12 = arith.cmpi eq, %arg1, %c0_i32_9 : i32
    %13 = arith.extui %12 : i1 to i32
    %c0_i32_10 = arith.constant 0 : i32
    %14 = arith.cmpi ne, %13, %c0_i32_10 : i32
    scf.if %14 {
      %c0_11 = arith.constant 0 : index
      %c0_12 = arith.constant 0 : index
      %15 = vector.load %arg4[%c0_11, %c0_12] : memref<3x256xf32, #tpu.memory_space<vmem>>, vector<3x256xf32>
      %16 = vector.shape_cast %15 : vector<3x256xf32> to vector<1x3x256xf32>
      %cst = arith.constant dense<0.000000e+00> : vector<1xf32>
      %17 = vector.multi_reduction <add>, %16, %cst [1, 2] : vector<1x3x256xf32> to vector<1xf32>
      %18 = vector.shape_cast %17 : vector<1xf32> to vector<1x1x1xf32>
      %19 = vector.extract %18[0, 0, 0] : f32 from vector<1x1x1xf32>
      %cst_13 = arith.constant 0.00130208337 : f32
      %20 = arith.mulf %19, %cst_13 : f32
      %21 = vector.broadcast %20 : f32 to vector<1x1x1xf32>
      %c0_14 = arith.constant 0 : index
      %c0_15 = arith.constant 0 : index
      %c0_16 = arith.constant 0 : index
      %22 = vector.load %arg3[%c0_14, %c0_15, %c0_16] : memref<1x1x1xf32, #tpu.memory_space<vmem>>, vector<1x1x1xf32>
      tpu.vector_store %arg3[%c0_14, %c0_15, %c0_16], %21 {strides = array<i32>} : memref<1x1x1xf32, #tpu.memory_space<vmem>>, vector<1x1x1xf32>,
    } else {
    }
    return
  }
  func.func @transform_0(%arg0: i32, %arg1: i32) -> (i32, i32, i32) {
    %c0_i32 = arith.constant 0 : i32
    %c0_i32_0 = arith.constant 0 : i32
    return %arg0, %c0_i32, %arg1 : i32, i32, i32
  }
  func.func @transform_1(%arg0: i32, %arg1: i32) -> (i32, i32, i32) {
    %c0_i32 = arith.constant 0 : i32
    %c0_i32_0 = arith.constant 0 : i32
    %c0_i32_1 = arith.constant 0 : i32
    return %arg0, %c0_i32, %c0_i32_0 : i32, i32, i32
  }
}

</mosaic_0001>

<llo_original>
// kernel: tpu_custom_call.1
$region0: #{tpu_custom_call.1}
  #allocation0 [shape = 'u32[]', space=smem, size = 0x4, offset = 0x4, fixed_abs, tag = 'smem constant byte address 0x4 - core index']
  #allocation1 [shape = 'u32[144,128]{1,0:T(1,128)}', space=vmem, size = 0x12000, scoped, tag = 'internal scratch']
  #allocation2 [shape = 'f32[3,256]{1,0:T(4,128)}', space=vmem, size = 0x1000, scoped, tag = 'scratch operand']
  %s0 = inlined_call_operand.hbm [shape: f32[2,4,256], index: 0, kind: input, shape index: {}]
  %s1 = inlined_call_operand.vmem [shape: f32[2,1,1], index: 1, kind: output, shape index: {}]
  %s2 = sld [smem:[#allocation0]]
  $region49: #{tpu_custom_call.1} parent=0
    _
  %s4 = ssub.s32 1, %s2
  %s5 = scalar_select 0, %s4, %s2
  $region1: #{tpu_custom_call.1} parent=0
    #allocation3 [shape = 'u8[8192]{0}', space=vmem, size = 0x2000, scoped, tag = 'input window, operand 0']
    #allocation4 [shape = 's32[2]{0}', space=sflag, size = 0x8, scoped, tag = 'scoped memory for tpu_custom_call.1']
    %6 = vsyncpa [#allocation4], 0
    %s7 = scalar_lea.sflag [#allocation4], 1
    %8 = vsyncpa %s7, 0
    loop: start=0, step=1, limit=4
    $region2: #{tpu_custom_call.1} parent=1 // loop_pre_header
      _
    $region3: #{tpu_custom_call.1} parent=1 // loop_header
      %s10 = sphi 0, %s14
      %p11 = scmp.ge.s32.totalorder %s10, 4
      %s17 = sphi 0, %s29
      %s18 = sphi 0, %s25
      %s19 = sphi 0, %s17
      %s20 = sphi 0, %s18
      %s21 = sphi 0, %s19
      %s22 = sphi 0, %s20
      %s34 = sphi 0, %s36
      %s37 = sphi 0, %s34
      %s38 = sphi 0, %s37
      %s54 = sphi 0, %s38
      %s60 = sphi 0, %s62
      %s63 = sphi 0, %s60
      %s64 = sphi 0, %s63
      %s80 = sphi 0, %s64
    $region4: #{tpu_custom_call.1} parent=1 // loop_header_branch
      %13 = sbr.rel (%p11) target = $region8
    $region5: #{tpu_custom_call.1} parent=1 // loop_body
      %s15 = ssub.s32 %s10, 1
      %s16 = ssub.s32 %s10, 2
      %s23 = sadd.s32 1, %s18
      %p24 = scmp.ge.s32.totalorder %s23, 1
      %s25 = scalar_select %p24, 0, %s23
      %s26 = sadd.s32 1, %s17
      %s27 = scalar_select %p24, %s26, %s17
      %p28 = scmp.ge.s32.totalorder %s27, 2
      %s29 = scalar_select %p28, 0, %s27
      %s30 = ssub.s32 %s17, %s29
      %s31 = ssub.s32 %s18, %s25
      %s32 = sor.u32 %s30, %s31
      %p33 = scmp.eq.s32.totalorder %s32, 0
      %s35 = sadd.s32 %s34, 1
      %s36 = scalar_select %p33, %s34, %s35
      %p39 = pneg %p33
      %p40 = scmp.eq.s32.totalorder %s10, 1
      %p41 = por %p39, %p40
      %p42 = scmp.ne.s32.totalorder %s34, %s37
      %p43 = scmp.eq.s32.totalorder %s10, 0
      %p44 = por %p42, %p43
      %p45 = scmp.ne.s32.totalorder %s34, %s37
      %p46 = scmp.eq.s32.totalorder %s15, 1
      %p47 = por %p45, %p46
      %p48 = scmp.ne.s32.totalorder %s37, %s38
      %p49 = scmp.eq.s32.totalorder %s15, 0
      %p50 = por %p48, %p49
      %p51 = scmp.ne.s32.totalorder %s37, %s38
      %p52 = scmp.eq.s32.totalorder %s16, 1
      %p53 = por %p51, %p52
      %p55 = scmp.ne.s32.totalorder %s38, %s54
      %p56 = scmp.eq.s32.totalorder %s16, 0
      %p57 = por %p55, %p56
      %s58 = ssub.s32 %s17, %s29
      %p59 = scmp.eq.s32.totalorder %s58, 0
      %s61 = sadd.s32 %s60, 1
      %s62 = scalar_select %p59, %s60, %s61
      %p65 = pneg %p59
      %p66 = scmp.eq.s32.totalorder %s10, 1
      %p67 = por %p65, %p66
      %p68 = scmp.ne.s32.totalorder %s60, %s63
      %p69 = scmp.eq.s32.totalorder %s10, 0
      %p70 = por %p68, %p69
      %p71 = scmp.ne.s32.totalorder %s60, %s63
      %p72 = scmp.eq.s32.totalorder %s15, 1
      %p73 = por %p71, %p72
      %p74 = scmp.ne.s32.totalorder %s63, %s64
      %p75 = scmp.eq.s32.totalorder %s15, 0
      %p76 = por %p74, %p75
      %p77 = scmp.ne.s32.totalorder %s63, %s64
      %p78 = scmp.eq.s32.totalorder %s16, 1
      %p79 = por %p77, %p78
      %p81 = scmp.ne.s32.totalorder %s64, %s80
      %p82 = scmp.eq.s32.totalorder %s16, 0
      %p83 = por %p81, %p82
      %p84 = scmp.le.s32.totalorder 1, %s10
      %p85 = scmp.lt.s32.totalorder %s10, 3
      %p86 = pnand %p84, %p85
      %p87 = pneg %p86
      // Predicated region
      $region9: #{tpu_custom_call.1} parent=5 // pred_check
        _
      $region10: #{tpu_custom_call.1} parent=5 // pred_check_branch
        %89 = sbr.rel (%p86) target = $region12
      $region11: #{tpu_custom_call.1} parent=5 // pred_region
        %s90 = ssub.s32 %s10, 1
      $region12: #{tpu_custom_call.1} parent=5 // pred_fallthru
        _
      %p91 = scmp.lt.s32.totalorder %s10, 2
      // Predicated region
      $region13: #{tpu_custom_call.1} parent=5 // pred_check
        %p92 = pneg %p91
      $region14: #{tpu_custom_call.1} parent=5 // pred_check_branch
        %94 = sbr.rel (%p92) target = $region16
      $region15: #{tpu_custom_call.1} parent=5 // pred_region
        // Predicated region
        $region17: #{tpu_custom_call.1} parent=15 // pred_check
          %p95 = pneg %p44
        $region18: #{tpu_custom_call.1} parent=15 // pred_check_branch
          %97 = sbr.rel (%p95) target = $region20
        $region19: #{tpu_custom_call.1} parent=15 // pred_region
          %s98 = sand.u32 %s34, 1
          %s99 = scalar_lea.sflag [#allocation4], %s98
          %s100 = sand.u32 %s34, 1
          %s101 = smul.addr %s100, 8
          %s102 = scalar_lea.vmem [#allocation3], %s101
          %s103 = smul.u32 2, %s18
          %s105 = ssub.s32 128, 128
          %106 = vsyncadd %s99, %s105
          %s107 = smul.addr %s17, 2
          %s108 = sadd.s32 %s103, %s107
          %s109 = smul.addr %s108, 64
          %s110 = scalar_lea.hbm %s0, %s109
          %s112 = sshll.u32 %s102, 4
          %s113 = int_to_ptr.vmem [resolvable:$true] %s112
          %115 = dma.hbm_to_vmem [thread:$0]  %s110, 128, %s113, %s99
        $region20: #{tpu_custom_call.1} parent=15 // pred_fallthru
          _
      $region16: #{tpu_custom_call.1} parent=5 // pred_fallthru
        _
      %p116 = scmp.le.s32.totalorder 1, %s10
      %p117 = scmp.lt.s32.totalorder %s10, 3
      %p118 = pnand %p116, %p117
      %p119 = pneg %p118
      // Predicated region
      $region21: #{tpu_custom_call.1} parent=5 // pred_check
        _
      $region22: #{tpu_custom_call.1} parent=5 // pred_check_branch
        %121 = sbr.rel (%p118) target = $region24
      $region23: #{tpu_custom_call.1} parent=5 // pred_region
        %s122 = ssub.s32 %s10, 1
        %s123 = sand.u32 %s37, 1
        %s124 = scalar_lea.sflag [#allocation4], %s123
        %s125 = sand.u32 %s37, 1
        %s126 = smul.addr %s125, 8
        %s127 = scalar_lea.vmem [#allocation3], %s126
        // Predicated region
        $region25: #{tpu_custom_call.1} parent=23 // pred_check
          %p128 = pneg %p50
        $region26: #{tpu_custom_call.1} parent=23 // pred_check_branch
          %130 = sbr.rel (%p128) target = $region28
        $region27: #{tpu_custom_call.1} parent=23 // pred_region
          %131 = dma.done %s124, 128
        $region28: #{tpu_custom_call.1} parent=23 // pred_fallthru
          _
        %s132 = sand.u32 %s37, 1
        %s133 = scalar_lea.sflag [#allocation4], %s132
        %s134 = sand.u32 %s37, 1
        %s135 = smul.addr %s134, 8
        %s136 = scalar_lea.vmem [#allocation3], %s135
        %p137 = pneg %p50
        %p138 = pneg %p47
        %p139 = pneg %p76
        %p140 = pneg %p73
        %p141 = scmp.lt.s32.totalorder %s19, 1
        %s142 = scalar_select %p141, %s19, 1
        %s143 = scalar_lea.vmem %s1, %s142
        %s144 = smul.u32 2, %s20
        %p145 = scmp.lt.s32.totalorder %s19, 1
        %s146 = scalar_select %p145, %s19, 1
        %s147 = scalar_lea.vmem %s1, %s146
        %p148 = scmp.eq.s32.totalorder %s20, 0
        // Predicated region
        $region29: #{tpu_custom_call.1} parent=23 // pred_check
          %p149 = pneg %p148
        $region30: #{tpu_custom_call.1} parent=23 // pred_check_branch
          %151 = sbr.rel (%p149) target = $region32
        $region31: #{tpu_custom_call.1} parent=23 // pred_region
          %152 = vst [vmem:[#allocation2] sm:$0x77] 0.0
        $region32: #{tpu_custom_call.1} parent=23 // pred_fallthru
          _
        %v153 = vld [vmem:[%s127] sm:$0xee]
        %v154 = vld [vmem:[%s127] sm:$0x77]
        %v156 = vrot.slane %v154, 7
        %v158 = vsub.f32 %v153, %v156
        %v159 = vld [vmem:[#allocation2] sm:$0x77]
        %v160 = vmul.f32 %v158, %v158
        %v162 = vrot.slane %v160, 5
        %v163 = vrot.slane %v162, 4
        %v165 = vadd.f32 %v159, %v163
        %166 = vst [vmem:[#allocation2] sm:$0x77] %v165
        // Predicated region
        $region33: #{tpu_custom_call.1} parent=23 // pred_check
          %p167 = pneg %p148
        $region34: #{tpu_custom_call.1} parent=23 // pred_check_branch
          %169 = sbr.rel (%p167) target = $region36
        $region35: #{tpu_custom_call.1} parent=23 // pred_region
          %v170 = vld [vmem:[#allocation2] sm:$0x77]
          %v172 = vcombine.high %v170, %v170
          %vm174 = vcmask 1042432
          %v175 = vsel %vm174, %v170, 0.0
          %v176 = vsel %vm174, %v172, 0.0
          %v177 = vadd.f32 %v175, %v176
          %178 = vadd.xlane.f32.xlu0 %v177
          %v179 = vpop.xlane.xlu0 %178
          %v180 = vrot.slane %v179, 4
          %v181 = vadd.f32 %v179, %v180
          %v182 = vrot.slane %v181, 2
          %v183 = vadd.f32 %v181, %v182
          %v184 = vrot.slane %v183, 1
          %v185 = vadd.f32 %v183, %v184
          %s186 = vtos %v185
          %s187 = smul.f32 %s186, 0.0013020834
          %v188 = vstv %s187
          %vm189 = vcmask 0
          %190 = vst.msk [vmem:[%s147] sm:$0x1] %vm189, %v188
        $region36: #{tpu_custom_call.1} parent=23 // pred_fallthru
          _
        %p191 = scmp.lt.s32.totalorder %s19, 1
        %s192 = scalar_select %p191, %s19, 1
        %s193 = scalar_lea.vmem %s1, %s192
        // Predicated region
        $region37: #{tpu_custom_call.1} parent=23 // pred_check
          %p194 = pneg %p73
        $region38: #{tpu_custom_call.1} parent=23 // pred_check_branch
          %196 = sbr.rel (%p194) target = $region40
        $region39: #{tpu_custom_call.1} parent=23 // pred_region
          _
        $region40: #{tpu_custom_call.1} parent=23 // pred_fallthru
          _
      $region24: #{tpu_custom_call.1} parent=5 // pred_fallthru
        _
      %p197 = scmp.le.s32.totalorder 2, %s10
      // Predicated region
      $region41: #{tpu_custom_call.1} parent=5 // pred_check
        %p198 = pneg %p197
      $region42: #{tpu_custom_call.1} parent=5 // pred_check_branch
        %200 = sbr.rel (%p198) target = $region44
      $region43: #{tpu_custom_call.1} parent=5 // pred_region
        %s201 = ssub.s32 %s10, 2
        // Predicated region
        $region45: #{tpu_custom_call.1} parent=43 // pred_check
          %p202 = pneg %p79
        $region46: #{tpu_custom_call.1} parent=43 // pred_check_branch
          %204 = sbr.rel (%p202) target = $region48
        $region47: #{tpu_custom_call.1} parent=43 // pred_region
          %p205 = scmp.lt.s32.totalorder %s21, 1
          %s206 = scalar_select %p205, %s21, 1
          %s207 = scalar_lea.vmem %s1, %s206
        $region48: #{tpu_custom_call.1} parent=43 // pred_fallthru
          _
      $region44: #{tpu_custom_call.1} parent=5 // pred_fallthru
        _
    $region6: #{tpu_custom_call.1} parent=1 // loop_footer
      %s14 = sadd.s32 1, %s10
    $region7: #{tpu_custom_call.1} parent=1 // loop_footer_branch
      %9 = sbr.rel target = $region3
    $region8: #{tpu_custom_call.1} parent=1 // loop_exit
      _
    %208 = vsyncpa [#allocation4], 1
    %s209 = scalar_lea.sflag [#allocation4], 1
    %210 = vsyncpa %s209, 1

</llo_original>
